<compile_context>
chip_gen: v6e
topology: v6e:2x2x1
jax: 0.10.0
libtpu: 0.0.40
codegen_flags: <defaults>
</compile_context>

<pallas_src>
import jax
import jax.numpy as jnp
from jax.experimental import pallas as pl
from jax.experimental.pallas import tpu as pltpu


def _round_up(x, m):
    return ((x + m - 1) // m) * m


def _random_feature_kernel(x_ref, b_ref, c_ref, o_ref):
    # One grid step: a (tb, C) slab of x against the full (C, Mp) B and the
    # (1, Mp) bias.  K = C is tiny (often 4) so the kernel is HBM-bound; the
    # MXU matmul is hidden behind the output store stream.  (An unrolled VPU
    # broadcast-FMA over K was considered but is only worth it if a bundle
    # dump shows the MXU result FIFO gating the stores.)
    y = jnp.dot(x_ref[...], b_ref[...], preferred_element_type=jnp.float32)
    y = y + c_ref[...]
    o_ref[...] = y.astype(o_ref.dtype)


def _pick_tile_batch(n, c, m_pad, requested, vmem_budget_bytes):
    """Choose the batch tile: as large as requested (amortizes per-step
    overhead), a multiple of 8, double-buffered blocks within the VMEM
    budget, and >= 2 grid steps when possible (v7x megacore)."""
    itemsize = 4  # float32
    # Lane-padded VMEM footprint of one x row / one output row.
    x_row_bytes = _round_up(c, 128) * itemsize
    y_row_bytes = m_pad * itemsize
    # Grid-invariant B and bias blocks (also double-buffered by the pipeline).
    const_bytes = 2 * (_round_up(c, 8) * m_pad + 8 * m_pad) * itemsize

    tb = max(8, _round_up(min(requested, n), 8))
    if n > 8:
        # Keep at least two grid steps so both v7x TensorCores are used
        # (neutral on single-TC v5e/v6e).
        tb = min(tb, max(8, _round_up(pl.cdiv(n, 2), 8)))
    # Shrink until the double-buffered working set fits the budget.
    while tb > 8 and const_bytes + 2 * tb * (x_row_bytes + y_row_bytes) > vmem_budget_bytes:
        tb = max(8, _round_up(tb // 2, 8))
    return tb


def random_feature_transform(x, B, c, *, tile_batch=1024,
                             vmem_budget_bytes=12 * 1024 * 1024):
    """y = x @ B + c via a Pallas TPU kernel.

    x: (N, C), B: (C, M), c: (M,)  ->  y: (N, M).  Works for arbitrary N and
    any mapping_size M (M is padded to a lane multiple internally).
    """
    N, C = x.shape
    C2, M = B.shape
    assert C == C2, f"Expected input to have {C2} channels (got {C})"
    assert c.shape == (M,)

    # Lane-dense output: pad the mapping dim to a multiple of 128 (zero
    # columns in B / zeros in c produce zero outputs that are sliced off).
    Mp = _round_up(M, 128)
    if Mp != M:
        B = jnp.pad(B, ((0, 0), (0, Mp - M)))
        c = jnp.pad(c, (0, Mp - M))
    c2d = c.reshape(1, Mp)

    tb = _pick_tile_batch(N, C, Mp, tile_batch, vmem_budget_bytes)
    grid = (pl.cdiv(N, tb),)  # ragged last tile is masked by Pallas

    cost = pl.CostEstimate(
        flops=2 * N * C * M,
        bytes_accessed=4 * (N * C + C * M + N * M + M),
        transcendentals=0,
    )

    out = pl.pallas_call(
        _random_feature_kernel,
        out_shape=jax.ShapeDtypeStruct((N, Mp), x.dtype),
        grid_spec=pltpu.PrefetchScalarGridSpec(
            num_scalar_prefetch=0,
            grid=grid,
            in_specs=[
                # x tile along batch; full (tiny) channel extent.  The (tb, C)
                # block lane-pads C up to 128 in VMEM; that padding is already
                # accounted for in _pick_tile_batch's budget.
                pl.BlockSpec((tb, C), lambda i: (i, 0)),
                # B and bias are grid-invariant -> DMA'd once, reused.
                pl.BlockSpec((C, Mp), lambda i: (0, 0)),
                pl.BlockSpec((1, Mp), lambda i: (0, 0)),
            ],
            out_specs=pl.BlockSpec((tb, Mp), lambda i: (i, 0)),
        ),
        compiler_params=pltpu.CompilerParams(
            dimension_semantics=("parallel",),
        ),
        cost_estimate=cost,
    )(x, B, c2d)

    return out[:, :M] if Mp != M else out


if __name__ == "__main__":
    key = jax.random.PRNGKey(0)

    def run_case(batch, num_input_channels, mapping_size, scale, k):
        kx, kB, kc = jax.random.split(k, 3)
        x = jax.random.normal(kx, (batch, num_input_channels), dtype=jnp.float32)
        Bm = jax.random.normal(kB, (num_input_channels, mapping_size),
                               dtype=jnp.float32) * scale
        cv = jax.random.normal(kc, (mapping_size,), dtype=jnp.float32) * scale

        y = jax.block_until_ready(random_feature_transform(x, Bm, cv))
        y_ref = x @ Bm + cv
        assert y.shape == (batch, mapping_size)
        assert jnp.allclose(y, y_ref, atol=1e-5, rtol=1e-5), "mismatch vs reference"

    k1, k2 = jax.random.split(key)
    # Lane-dense mapping size (multiple of 128); exercises the >=2-grid-step path.
    run_case(batch=64, num_input_channels=4, mapping_size=128, scale=1.0, k=k1)
    # Ragged batch + small mapping size; exercises lane padding + masked tail.
    run_case(batch=10, num_input_channels=4, mapping_size=32, scale=1.0, k=k2)

    print("KERNEL_OK")
</pallas_src>

<mosaic_0001>
module attributes {stable_mosaic.version = 11 : i64} {
  func.func @_random_feature_kernel(%arg0: i32, %arg1: memref<32x4xf32, #tpu.memory_space<vmem>>, %arg2: memref<4x128xf32, #tpu.memory_space<vmem>>, %arg3: memref<1x128xf32, #tpu.memory_space<vmem>>, %arg4: memref<32x128xf32, #tpu.memory_space<vmem>>) attributes {dimension_semantics = [#tpu.dimension_semantics<parallel>], iteration_bounds = array<i64: 2>, scalar_prefetch = 0 : i64, scratch_operands = 0 : i64, tpu.core_type = #tpu.core_type<tc>, window_params = [{transform_indices = @transform_0, window_bounds = array<i64: 32, 4>}, {pipeline_mode = #tpu.pipeline_mode<synchronous>, transform_indices = @transform_1, window_bounds = array<i64: 4, 128>}, {pipeline_mode = #tpu.pipeline_mode<synchronous>, transform_indices = @transform_2, window_bounds = array<i64: 1, 128>}, {transform_indices = @transform_3, window_bounds = array<i64: 32, 128>}]} {
    %c0 = arith.constant 0 : index
    %c0_0 = arith.constant 0 : index
    %0 = vector.load %arg1[%c0, %c0_0] : memref<32x4xf32, #tpu.memory_space<vmem>>, vector<32x4xf32>
    %c0_1 = arith.constant 0 : index
    %c0_2 = arith.constant 0 : index
    %1 = vector.load %arg2[%c0_1, %c0_2] : memref<4x128xf32, #tpu.memory_space<vmem>>, vector<4x128xf32>
    %cst = arith.constant dense<0.000000e+00> : vector<32x128xf32>
    %2 = tpu.matmul %0, %1, %cst {dimension_numbers = #tpu.dot_dimension_numbers<[1], [0], [0], [1], [0, 0, 1, 1], [], []>} : vector<32x4xf32>, vector<4x128xf32>, vector<32x128xf32> -> vector<32x128xf32>
    %c0_3 = arith.constant 0 : index
    %c0_4 = arith.constant 0 : index
    %3 = vector.load %arg3[%c0_3, %c0_4] : memref<1x128xf32, #tpu.memory_space<vmem>>, vector<1x128xf32>
    %4 = vector.broadcast %3 : vector<1x128xf32> to vector<32x128xf32>
    %5 = arith.addf %2, %4 : vector<32x128xf32>
    %c0_5 = arith.constant 0 : index
    %c0_6 = arith.constant 0 : index
    %6 = vector.load %arg4[%c0_5, %c0_6] : memref<32x128xf32, #tpu.memory_space<vmem>>, vector<32x128xf32>
    tpu.vector_store %arg4[%c0_5, %c0_6], %5 {strides = array<i32>} : memref<32x128xf32, #tpu.memory_space<vmem>>, vector<32x128xf32>,
    return
  }
  func.func @transform_0(%arg0: i32) -> (i32, i32) {
    %c0_i32 = arith.constant 0 : i32
    %c0_i32_0 = arith.constant 0 : i32
    return %arg0, %c0_i32 : i32, i32
  }
  func.func @transform_1(%arg0: i32) -> (i32, i32) {
    %c0_i32 = arith.constant 0 : i32
    %c0_i32_0 = arith.constant 0 : i32
    %c0_i32_1 = arith.constant 0 : i32
    return %c0_i32, %c0_i32_0 : i32, i32
  }
  func.func @transform_2(%arg0: i32) -> (i32, i32) {
    %c0_i32 = arith.constant 0 : i32
    %c0_i32_0 = arith.constant 0 : i32
    %c0_i32_1 = arith.constant 0 : i32
    return %c0_i32, %c0_i32_0 : i32, i32
  }
  func.func @transform_3(%arg0: i32) -> (i32, i32) {
    %c0_i32 = arith.constant 0 : i32
    %c0_i32_0 = arith.constant 0 : i32
    return %arg0, %c0_i32 : i32, i32
  }
}

</mosaic_0001>

<llo_original>
// kernel: tpu_custom_call.1
$region0: #{tpu_custom_call.1}
  #allocation0 [shape = 'u32[]', space=smem, size = 0x4, offset = 0x4, fixed_abs, tag = 'smem constant byte address 0x4 - core index']
  #allocation1 [shape = 'u32[144,128]{1,0:T(1,128)}', space=vmem, size = 0x12000, scoped, tag = 'internal scratch']
  %s0 = inlined_call_operand.vmem [shape: f32[64,4], index: 0, kind: input, shape index: {}]
  %s1 = inlined_call_operand.vmem [shape: f32[4,128], index: 1, kind: input, shape index: {}]
  %s2 = inlined_call_operand.vmem [shape: f32[1,128], index: 2, kind: input, shape index: {}]
  %s3 = inlined_call_operand.hbm [shape: f32[64,128], index: 3, kind: output, shape index: {}]
  %s4 = sld [smem:[#allocation0]]
  $region45: #{tpu_custom_call.1} parent=0
    _
  %s6 = ssub.s32 1, %s4
  %s7 = scalar_select 0, %s6, %s4
  $region1: #{tpu_custom_call.1} parent=0
    #allocation2 [shape = 'u8[32768]{0}', space=vmem, size = 0x8000, scoped, tag = 'output window, operand 0']
    #allocation3 [shape = 's32[2]{0}', space=sflag, size = 0x8, scoped, tag = 'scoped memory for tpu_custom_call.1']
    %8 = vsyncpa [#allocation3], 0
    %s9 = scalar_lea.sflag [#allocation3], 1
    %10 = vsyncpa %s9, 0
    loop: start=0, step=1, limit=4
    $region2: #{tpu_custom_call.1} parent=1 // loop_pre_header
      _
    $region3: #{tpu_custom_call.1} parent=1 // loop_header
      %s12 = sphi 0, %s16
      %p13 = scmp.ge.s32.totalorder %s12, 4
      %s22 = sphi 0, %s24
      %s25 = sphi 0, %s22
      %s26 = sphi 0, %s25
      %s42 = sphi 0, %s26
      %s46 = sphi 0, %s46
      %s48 = sphi 0, %s46
      %s49 = sphi 0, %s48
      %s63 = sphi 0, %s49
      %s67 = sphi 0, %s67
      %s69 = sphi 0, %s67
      %s70 = sphi 0, %s69
      %s84 = sphi 0, %s70
      %s90 = sphi 0, %s92
      %s93 = sphi 0, %s90
      %s94 = sphi 0, %s93
      %s110 = sphi 0, %s94
    $region4: #{tpu_custom_call.1} parent=1 // loop_header_branch
      %15 = sbr.rel (%p13) target = $region8
    $region5: #{tpu_custom_call.1} parent=1 // loop_body
      %s17 = ssub.s32 %s12, 1
      %s18 = ssub.s32 %s12, 2
      %s19 = sadd.s32 %s12, 1
      %s20 = ssub.s32 %s12, %s19
      %p21 = scmp.eq.s32.totalorder %s20, 0
      %s23 = sadd.s32 %s22, 1
      %s24 = scalar_select %p21, %s22, %s23
      %p27 = pneg %p21
      %p28 = scmp.eq.s32.totalorder %s12, 1
      %p29 = por %p27, %p28
      %p30 = scmp.ne.s32.totalorder %s22, %s25
      %p31 = scmp.eq.s32.totalorder %s12, 0
      %p32 = por %p30, %p31
      %p33 = scmp.ne.s32.totalorder %s22, %s25
      %p34 = scmp.eq.s32.totalorder %s17, 1
      %p35 = por %p33, %p34
      %p36 = scmp.ne.s32.totalorder %s25, %s26
      %p37 = scmp.eq.s32.totalorder %s17, 0
      %p38 = por %p36, %p37
      %p39 = scmp.ne.s32.totalorder %s25, %s26
      %p40 = scmp.eq.s32.totalorder %s18, 1
      %p41 = por %p39, %p40
      %p43 = scmp.ne.s32.totalorder %s26, %s42
      %p44 = scmp.eq.s32.totalorder %s18, 0
      %p45 = por %p43, %p44
      %s47 = sadd.s32 %s46, 1
      %p50 = scmp.eq.s32.totalorder %s12, 1
      %p51 = scmp.ne.s32.totalorder %s46, %s48
      %p52 = scmp.eq.s32.totalorder %s12, 0
      %p53 = por %p51, %p52
      %p54 = scmp.ne.s32.totalorder %s46, %s48
      %p55 = scmp.eq.s32.totalorder %s17, 1
      %p56 = por %p54, %p55
      %p57 = scmp.ne.s32.totalorder %s48, %s49
      %p58 = scmp.eq.s32.totalorder %s17, 0
      %p59 = por %p57, %p58
      %p60 = scmp.ne.s32.totalorder %s48, %s49
      %p61 = scmp.eq.s32.totalorder %s18, 1
      %p62 = por %p60, %p61
      %p64 = scmp.ne.s32.totalorder %s49, %s63
      %p65 = scmp.eq.s32.totalorder %s18, 0
      %p66 = por %p64, %p65
      %s68 = sadd.s32 %s67, 1
      %p71 = scmp.eq.s32.totalorder %s12, 1
      %p72 = scmp.ne.s32.totalorder %s67, %s69
      %p73 = scmp.eq.s32.totalorder %s12, 0
      %p74 = por %p72, %p73
      %p75 = scmp.ne.s32.totalorder %s67, %s69
      %p76 = scmp.eq.s32.totalorder %s17, 1
      %p77 = por %p75, %p76
      %p78 = scmp.ne.s32.totalorder %s69, %s70
      %p79 = scmp.eq.s32.totalorder %s17, 0
      %p80 = por %p78, %p79
      %p81 = scmp.ne.s32.totalorder %s69, %s70
      %p82 = scmp.eq.s32.totalorder %s18, 1
      %p83 = por %p81, %p82
      %p85 = scmp.ne.s32.totalorder %s70, %s84
      %p86 = scmp.eq.s32.totalorder %s18, 0
      %p87 = por %p85, %p86
      %s88 = ssub.s32 %s12, %s19
      %p89 = scmp.eq.s32.totalorder %s88, 0
      %s91 = sadd.s32 %s90, 1
      %s92 = scalar_select %p89, %s90, %s91
      %p95 = pneg %p89
      %p96 = scmp.eq.s32.totalorder %s12, 1
      %p97 = por %p95, %p96
      %p98 = scmp.ne.s32.totalorder %s90, %s93
      %p99 = scmp.eq.s32.totalorder %s12, 0
      %p100 = por %p98, %p99
      %p101 = scmp.ne.s32.totalorder %s90, %s93
      %p102 = scmp.eq.s32.totalorder %s17, 1
      %p103 = por %p101, %p102
      %p104 = scmp.ne.s32.totalorder %s93, %s94
      %p105 = scmp.eq.s32.totalorder %s17, 0
      %p106 = por %p104, %p105
      %p107 = scmp.ne.s32.totalorder %s93, %s94
      %p108 = scmp.eq.s32.totalorder %s18, 1
      %p109 = por %p107, %p108
      %p111 = scmp.ne.s32.totalorder %s94, %s110
      %p112 = scmp.eq.s32.totalorder %s18, 0
      %p113 = por %p111, %p112
      %p114 = scmp.le.s32.totalorder 1, %s12
      %p115 = scmp.lt.s32.totalorder %s12, 3
      %p116 = pnand %p114, %p115
      %p117 = pneg %p116
      // Predicated region
      $region9: #{tpu_custom_call.1} parent=5 // pred_check
        _
      $region10: #{tpu_custom_call.1} parent=5 // pred_check_branch
        %119 = sbr.rel (%p116) target = $region12
      $region11: #{tpu_custom_call.1} parent=5 // pred_region
        %s120 = ssub.s32 %s12, 1
        // Predicated region
        $region13: #{tpu_custom_call.1} parent=11 // pred_check
          %p121 = pneg %p59
        $region14: #{tpu_custom_call.1} parent=11 // pred_check_branch
          %123 = sbr.rel (%p121) target = $region16
        $region15: #{tpu_custom_call.1} parent=11 // pred_region
          _
        $region16: #{tpu_custom_call.1} parent=11 // pred_fallthru
          _
        // Predicated region
        $region17: #{tpu_custom_call.1} parent=11 // pred_check
          %p124 = pneg %p80
        $region18: #{tpu_custom_call.1} parent=11 // pred_check_branch
          %126 = sbr.rel (%p124) target = $region20
        $region19: #{tpu_custom_call.1} parent=11 // pred_region
          _
        $region20: #{tpu_custom_call.1} parent=11 // pred_fallthru
          _
      $region12: #{tpu_custom_call.1} parent=5 // pred_fallthru
        _
      %p127 = scmp.lt.s32.totalorder %s12, 2
      // Predicated region
      $region21: #{tpu_custom_call.1} parent=5 // pred_check
        %p128 = pneg %p127
      $region22: #{tpu_custom_call.1} parent=5 // pred_check_branch
        %130 = sbr.rel (%p128) target = $region24
      $region23: #{tpu_custom_call.1} parent=5 // pred_region
        // Predicated region
        $region25: #{tpu_custom_call.1} parent=23 // pred_check
          %p131 = pneg %p32
        $region26: #{tpu_custom_call.1} parent=23 // pred_check_branch
          %133 = sbr.rel (%p131) target = $region28
        $region27: #{tpu_custom_call.1} parent=23 // pred_region
          %s134 = smul.u32 4, %s12
          %p135 = scmp.lt.s32.totalorder %s134, 7
          %s136 = scalar_select %p135, %s134, 7
          %s137 = smul.addr %s136, 8
          %s138 = scalar_lea.vmem %s0, %s137
          %s139 = smul.u32 4, %s12
        $region28: #{tpu_custom_call.1} parent=23 // pred_fallthru
          _
      $region24: #{tpu_custom_call.1} parent=5 // pred_fallthru
        _
      %p140 = scmp.le.s32.totalorder 1, %s12
      %p141 = scmp.lt.s32.totalorder %s12, 3
      %p142 = pnand %p140, %p141
      %p143 = pneg %p142
      // Predicated region
      $region29: #{tpu_custom_call.1} parent=5 // pred_check
        _
      $region30: #{tpu_custom_call.1} parent=5 // pred_check_branch
        %145 = sbr.rel (%p142) target = $region32
      $region31: #{tpu_custom_call.1} parent=5 // pred_region
        %s146 = ssub.s32 %s12, 1
        %s147 = smul.u32 4, %s17
        %p148 = scmp.lt.s32.totalorder %s147, 7
        %s149 = scalar_select %p148, %s147, 7
        %s150 = smul.addr %s149, 8
        %s151 = scalar_lea.vmem %s0, %s150
        %p152 = pneg %p38
        %p153 = pneg %p35
        %p154 = pneg %p59
        %p155 = pneg %p56
        %p156 = pneg %p80
        %p157 = pneg %p77
        %p158 = pneg %p106
        %p159 = pneg %p103
        %s160 = sand.u32 %s93, 1
        %s161 = scalar_lea.sflag [#allocation3], %s160
        %s162 = sand.u32 %s93, 1
        %s163 = smul.addr %s162, 32
        %s164 = scalar_lea.vmem [#allocation2], %s163
        %s165 = smul.u32 4, %s17
        %p166 = scmp.lt.s32.totalorder %s165, 7
        %s167 = scalar_select %p166, %s165, 7
        %s168 = smul.addr %s167, 8
        %s169 = scalar_lea.vmem %s0, %s168
        %s170 = smul.u32 4, %s17
        %s171 = smul.u32 4, %s17
        %v172 = vld [vmem:[%s169] sm:$0xff]
        %v173 = vld [vmem:[%s169 + $0x8] sm:$0xff]
        %v174 = vld [vmem:[%s169 + $0x10] sm:$0xff]
        %v175 = vld [vmem:[%s169 + $0x18] sm:$0xff]
        %v176 = vld [vmem:[%s1] sm:$0xf]
        %v177 = vld [vmem:[%s2] sm:$0x1]
        %v179 = vlaneseq
        %v180 = vshrl.u32 %v179, 7
        %v181 = vsub.s32 0, %v180
        %v182 = vrot.slane %v177, %v181
        %vm184 = vcmask 31744
        %v186 = vsel %vm184, %v172, 0
        %v189 = vsel %vm184, %v173, 0
        %v192 = vsel %vm184, %v174, 0
        %v195 = vsel %vm184, %v175, 0
        %vm197 = vcmask 1043456
        %v199 = vsel %vm197, %v176, 0
        %201 = vmatprep.subr.mxu0 0.0
        %202 = vmatpush1.msra.mxu0 0.0
        %203 = vmatprep.subr.mxu0 0.0
        %204 = vmatpush1.msra.mxu0 0.0
        %205 = vmatprep.subr.mxu0 0.0
        %206 = vmatpush1.msra.mxu0 0.0
        %207 = vmatprep.subr.mxu0 0.0
        %208 = vmatpush1.msra.mxu0 0.0
        %209 = vmatprep.subr.mxu0 0.0
        %210 = vmatpush1.msra.mxu0 0.0
        %211 = vmatprep.subr.mxu0 0.0
        %212 = vmatpush1.msra.mxu0 0.0
        %213 = vmatprep.subr.mxu0 0.0
        %214 = vmatpush1.msra.mxu0 0.0
        %215 = vmatprep.subr.mxu0 0.0
        %216 = vmatpush1.msra.mxu0 0.0
        %217 = vmatprep.subr.mxu0 0.0
        %218 = vmatpush1.msra.mxu0 0.0
        %219 = vmatprep.subr.mxu0 0.0
        %220 = vmatpush1.msra.mxu0 0.0
        %221 = vmatprep.subr.mxu0 0.0
        %222 = vmatpush1.msra.mxu0 0.0
        %223 = vmatprep.subr.mxu0 0.0
        %224 = vmatpush1.msra.mxu0 0.0
        %225 = vmatprep.subr.mxu0 0.0
        %226 = vmatpush1.msra.mxu0 0.0
        %227 = vmatprep.subr.mxu0 0.0
        %228 = vmatpush1.msra.mxu0 0.0
        %229 = vmatprep.subr.mxu0 0.0
        %230 = vmatpush1.msra.mxu0 0.0
        %231 = vmatprep.subr.mxu0 0.0
        %232 = vmatpush1.msra.mxu0 %v199
        %233 = vmatprep.subr.mxu0 0.0
        %234 = vmatpush2.msra.mxu0 0.0
        %235 = vmatprep.subr.mxu0 0.0
        %236 = vmatpush2.msra.mxu0 0.0
        %237 = vmatprep.subr.mxu0 0.0
        %238 = vmatpush2.msra.mxu0 0.0
        %239 = vmatprep.subr.mxu0 0.0
        %240 = vmatpush2.msra.mxu0 0.0
        %241 = vmatprep.subr.mxu0 0.0
        %242 = vmatpush2.msra.mxu0 0.0
        %243 = vmatprep.subr.mxu0 0.0
        %244 = vmatpush2.msra.mxu0 0.0
        %245 = vmatprep.subr.mxu0 0.0
        %246 = vmatpush2.msra.mxu0 0.0
        %247 = vmatprep.subr.mxu0 0.0
        %248 = vmatpush2.msra.mxu0 0.0
        %249 = vmatprep.subr.mxu0 0.0
        %250 = vmatpush2.msra.mxu0 0.0
        %251 = vmatprep.subr.mxu0 0.0
        %252 = vmatpush2.msra.mxu0 0.0
        %253 = vmatprep.subr.mxu0 0.0
        %254 = vmatpush2.msra.mxu0 0.0
        %255 = vmatprep.subr.mxu0 0.0
        %256 = vmatpush2.msra.mxu0 0.0
        %257 = vmatprep.subr.mxu0 0.0
        %258 = vmatpush2.msra.mxu0 0.0
        %259 = vmatprep.subr.mxu0 0.0
        %260 = vmatpush2.msra.mxu0 0.0
        %261 = vmatprep.subr.mxu0 0.0
        %262 = vmatpush2.msra.mxu0 0.0
        %263 = vmatprep.subr.mxu0 0.0
        %264 = vmatpush2.msra.mxu0 0.0
        %265 = vmatprep.mubr.f32.mxu0 0.0
        %266 = vmatmul.mubr.f32.gmra.mxu0 %v186
        %v267 = vpop.f32.mrf.mxu0
        %v268 = vadd.f32 %v182, %v267
        %v269 = vpop.f32.mrf.mxu0
        %270 = vmatprep.mubr.f32.mxu0 0.0
        %271 = vmatmul.mubr.f32.gmra.mxu0 %v189
        %v272 = vpop.f32.mrf.mxu0
        %v273 = vadd.f32 %v182, %v272
        %v274 = vpop.f32.mrf.mxu0
        %275 = vmatprep.mubr.f32.mxu0 0.0
        %276 = vmatmul.mubr.f32.gmra.mxu0 %v192
        %v277 = vpop.f32.mrf.mxu0
        %v278 = vadd.f32 %v182, %v277
        %v279 = vpop.f32.mrf.mxu0
        %280 = vmatprep.mubr.f32.mxu0 0.0
        %281 = vmatmul.mubr.f32.gmra.mxu0 %v195
        %v282 = vpop.f32.mrf.mxu0
        %v283 = vadd.f32 %v182, %v282
        %v284 = vpop.f32.mrf.mxu0
        %285 = vdwg.mxu0
        %286 = vst [vmem:[%s164] sm:$0xff] %v268
        %287 = vst [vmem:[%s164 + $0x8] sm:$0xff] %v273
        %288 = vst [vmem:[%s164 + $0x10] sm:$0xff] %v278
        %289 = vst [vmem:[%s164 + $0x18] sm:$0xff] %v283
        %s290 = sand.u32 %s93, 1
        %s291 = scalar_lea.sflag [#allocation3], %s290
        %s292 = sand.u32 %s93, 1
        %s293 = smul.addr %s292, 32
        %s294 = scalar_lea.vmem [#allocation2], %s293
        // Predicated region
        $region33: #{tpu_custom_call.1} parent=31 // pred_check
          %p295 = pneg %p103
        $region34: #{tpu_custom_call.1} parent=31 // pred_check_branch
          %297 = sbr.rel (%p295) target = $region36
        $region35: #{tpu_custom_call.1} parent=31 // pred_region
          %s298 = smul.u32 4, %s17
          %s300 = ssub.s32 512, 512
          %301 = vsyncadd %s291, %s300
          %s302 = smul.addr %s298, 128
          %s303 = scalar_lea.hbm %s3, %s302
          %s304 = sshll.u32 %s294, 4
          %s305 = int_to_ptr.vmem [resolvable:$true] %s304
          %310 = dma.vmem_to_hbm [thread:$0]  %s305, 512, %s303, %s291, 128, 128, 8
        $region36: #{tpu_custom_call.1} parent=31 // pred_fallthru
          _
      $region32: #{tpu_custom_call.1} parent=5 // pred_fallthru
        _
      %p311 = scmp.le.s32.totalorder 2, %s12
      // Predicated region
      $region37: #{tpu_custom_call.1} parent=5 // pred_check
        %p312 = pneg %p311
      $region38: #{tpu_custom_call.1} parent=5 // pred_check_branch
        %314 = sbr.rel (%p312) target = $region40
      $region39: #{tpu_custom_call.1} parent=5 // pred_region
        %s315 = ssub.s32 %s12, 2
        // Predicated region
        $region41: #{tpu_custom_call.1} parent=39 // pred_check
          %p316 = pneg %p109
        $region42: #{tpu_custom_call.1} parent=39 // pred_check_branch
          %318 = sbr.rel (%p316) target = $region44
        $region43: #{tpu_custom_call.1} parent=39 // pred_region
          %s319 = sand.u32 %s94, 1
          %s320 = scalar_lea.sflag [#allocation3], %s319
          %s321 = sand.u32 %s94, 1
          %s322 = smul.addr %s321, 32
          %s323 = scalar_lea.vmem [#allocation2], %s322
          %324 = dma.done %s320, 512
        $region44: #{tpu_custom_call.1} parent=39 // pred_fallthru
          _
      $region40: #{tpu_custom_call.1} parent=5 // pred_fallthru
        _
    $region6: #{tpu_custom_call.1} parent=1 // loop_footer
      %s16 = sadd.s32 1, %s12
    $region7: #{tpu_custom_call.1} parent=1 // loop_footer_branch
      %11 = sbr.rel target = $region3
    $region8: #{tpu_custom_call.1} parent=1 // loop_exit
      _
    %325 = vsyncpa [#allocation3], 1
    %s326 = scalar_lea.sflag [#allocation3], 1
    %327 = vsyncpa %s326, 1

</llo_original>
